<compile_context>
chip_gen: v5e
topology: v5e:2x2
jax: 0.10.0
libtpu: 0.0.40
codegen_flags: <defaults>
</compile_context>

<pallas_src>
import math
import numpy as np

import jax
import jax.numpy as jnp
from jax import lax
from jax.experimental import pallas as pl
from jax.experimental.pallas import tpu as pltpu


def _positional_encoding(max_len: int, emb: int) -> np.ndarray:
    """Sin/cos positional encoding, identical to Encoder._get_encoding."""
    pos = np.arange(max_len)[:, None].astype(np.float64)
    i = np.arange(emb)[None, :].astype(np.float64)
    angle_rates = 1.0 / np.power(10000.0, 2.0 * (i // 2) / emb)
    angle_rads = pos * angle_rates
    angle_rads[:, 0::2] = np.sin(angle_rads[:, 0::2])
    angle_rads[:, 1::2] = np.cos(angle_rads[:, 1::2])
    return angle_rads[None, ...].astype(np.float32)  # (1, max_len, emb)


def _make_kernel(n_heads: int, head_dim: int, emb: int, rows: int):
    scale = 1.0 / math.sqrt(head_dim)

    def kernel(pe_ref, mcol_ref, mrow_ref, nbias_ref, x_ref,
               wqkv_ref, bqkv_ref, wo_ref, bo_ref, out_ref):
        # positional-encoding add (VPU)
        x = x_ref[...] + pe_ref[...]                                # (rows, E) bf16

        # Fused QKV projection: one (rows, E) @ (E, 3E) MXU matmul, f32 accumulation.
        qkv = jnp.dot(x, wqkv_ref[...],
                      preferred_element_type=jnp.float32) + bqkv_ref[...]   # (rows, 3E)

        # Additive attention mask for the block-diagonal packing of Bt sequences:
        #   within a sequence : outer(mask, mask) in {0, 1}  (faithful to the reference quirk)
        #   across sequences  : -1e30, so the packed softmax reduces exactly to the
        #                       per-sequence softmax over L keys.
        attn_mask = mcol_ref[...] * mrow_ref[...] + nbias_ref[...]  # (rows, rows) f32

        wo = wo_ref[...]                                            # (E, E) bf16
        acc = None
        for h in range(n_heads):                                    # static; default n_heads == 1
            lo, hi = h * head_dim, (h + 1) * head_dim
            qh = qkv[:, lo:hi].astype(jnp.bfloat16)
            kh = qkv[:, emb + lo:emb + hi].astype(jnp.bfloat16)
            vh = qkv[:, 2 * emb + lo:2 * emb + hi].astype(jnp.bfloat16)

            # logits = q @ k^T (contract last dims of both operands — MXU-native form).
            logits = lax.dot_general(qh, kh, (((1,), (1,)), ((), ())),
                                     preferred_element_type=jnp.float32)
            logits = logits * scale + attn_mask
            logits = logits - jnp.max(logits, axis=-1, keepdims=True)
            p = jnp.exp(logits)
            denom = jnp.sum(p, axis=-1, keepdims=True)
            p = p * pl.reciprocal(denom, approx=True)               # EUP slot, ~free

            ctx = jnp.dot(p.astype(jnp.bfloat16), vh,
                          preferred_element_type=jnp.float32)       # (rows, head_dim)
            # Accumulate each head straight through its slice of the output projection
            # (no lane-axis concat of heads).
            term = jnp.dot(ctx.astype(jnp.bfloat16), wo[lo:hi, :],
                           preferred_element_type=jnp.float32)      # (rows, E)
            acc = term if acc is None else acc + term

        out_ref[...] = (acc + bo_ref[...]).astype(out_ref.dtype)

    return kernel


def attention_encoder_forward(embeddings, mask, params, pos_encoding, n_heads):
    """Pallas implementation of AttentionEncoder.forward (eval mode, need_weights=False)."""
    B, L, E = embeddings.shape
    assert E % n_heads == 0
    head_dim = E // n_heads
    w_qkv, b_qkv, wo, bo = params

    # Pack Bt sequences per grid step so every MXU matmul sees >= 128 rows (128-row M
    # tiles also match the v5e MXU); pad the batch up to a multiple of Bt.
    Bt = max(1, 128 // L)
    B_pad = ((B + Bt - 1) // Bt) * Bt
    if B_pad != B:
        embeddings = jnp.pad(embeddings, ((0, B_pad - B), (0, 0), (0, 0)))
        mask = jnp.pad(mask, ((0, B_pad - B), (0, 0)))
    rows = Bt * L                       # rows per grid step
    total_rows = B_pad * L
    grid_len = B_pad // Bt
    assert rows % 8 == 0 and (rows % 128 == 0 or grid_len == 1)

    # Flatten batch x seq into MXU rows; activations in bf16 (f32 accumulation in-kernel).
    x_flat = embeddings.reshape(total_rows, E).astype(jnp.bfloat16)
    mask_f = mask.astype(jnp.float32)
    mask_col = mask_f.reshape(total_rows, 1)
    mask_row = mask_f.reshape(1, total_rows)

    # Positional encoding tiled to one block of rows (grid-invariant input).
    pe_tile = jnp.tile(pos_encoding[0].astype(jnp.bfloat16), (Bt, 1))       # (rows, E)

    # Static cross-sequence -1e30 additive bias for the block-diagonal packing.
    seq_id = np.arange(rows) // L
    neg_bias = jnp.asarray(
        np.where(seq_id[:, None] == seq_id[None, :], 0.0, -1e30), jnp.float32)

    kernel = _make_kernel(n_heads, head_dim, E, rows)

    flops = int(2 * total_rows * E * 3 * E          # fused QKV projection
                + 4 * total_rows * rows * E         # logits + attn @ v
                + 2 * total_rows * E * E)           # output projection
    transcendentals = int(n_heads * total_rows * rows + total_rows)
    bytes_accessed = int(total_rows * E * 2 + total_rows * E * 4 + rows * E * 2
                         + rows * rows * 4 + total_rows * 4 * 2
                         + (E * 3 * E + E * E) * 2 + 4 * E * 4)

    out_flat = pl.pallas_call(
        kernel,
        out_shape=jax.ShapeDtypeStruct((total_rows, E), jnp.float32),
        grid=(grid_len,),
        in_specs=[
            pl.BlockSpec((rows, E), lambda b: (0, 0)),        # positional encoding (invariant)
            pl.BlockSpec((rows, 1), lambda b: (b, 0)),        # padding mask as column
            pl.BlockSpec((1, rows), lambda b: (0, b)),        # padding mask as row
            pl.BlockSpec((rows, rows), lambda b: (0, 0)),     # cross-sequence -1e30 bias
            pl.BlockSpec((rows, E), lambda b: (b, 0)),        # embeddings (flattened rows)
            pl.BlockSpec((E, 3 * E), lambda b: (0, 0)),       # fused [Wq|Wk|Wv]^T, bf16
            pl.BlockSpec((1, 3 * E), lambda b: (0, 0)),       # fused [bq|bk|bv]
            pl.BlockSpec((E, E), lambda b: (0, 0)),           # Wo^T, bf16
            pl.BlockSpec((1, E), lambda b: (0, 0)),           # bo
        ],
        out_specs=pl.BlockSpec((rows, E), lambda b: (b, 0)),
        compiler_params=pltpu.CompilerParams(dimension_semantics=("parallel",)),
        cost_estimate=pl.CostEstimate(flops=flops, transcendentals=transcendentals,
                                      bytes_accessed=bytes_accessed),
    )(pe_tile, mask_col, mask_row, neg_bias, x_flat, w_qkv, b_qkv, wo, bo)

    out = out_flat[:B * L].reshape(B, L, E)
    # nn.MultiheadAttention(..., need_weights=False) returns (attn_output, None)
    return out, None


def reference_forward(embeddings, mask, params, pos_encoding, n_heads):
    """Pure-JAX reference of the same math with the same bf16-in / f32-accumulate numerics."""
    w_qkv, b_qkv, wo, bo = params
    B, L, E = embeddings.shape
    hd = E // n_heads
    scale = 1.0 / math.sqrt(hd)

    x = embeddings.astype(jnp.bfloat16) + pos_encoding.astype(jnp.bfloat16)     # (B, L, E)
    am = (mask[:, :, None] * mask[:, None, :]).astype(jnp.float32)              # (B, L, L)

    qkv = jnp.einsum("ble,ef->blf", x, w_qkv,
                     preferred_element_type=jnp.float32) + b_qkv                # (B, L, 3E)
    out = None
    for h in range(n_heads):
        lo, hi = h * hd, (h + 1) * hd
        qh = qkv[..., lo:hi].astype(jnp.bfloat16)
        kh = qkv[..., E + lo:E + hi].astype(jnp.bfloat16)
        vh = qkv[..., 2 * E + lo:2 * E + hi].astype(jnp.bfloat16)
        logits = jnp.einsum("bqd,bkd->bqk", qh, kh,
                            preferred_element_type=jnp.float32) * scale + am
        logits = logits - jnp.max(logits, axis=-1, keepdims=True)
        p = jnp.exp(logits)
        p = p / jnp.sum(p, axis=-1, keepdims=True)
        ctx = jnp.einsum("bqk,bkd->bqd", p.astype(jnp.bfloat16), vh,
                         preferred_element_type=jnp.float32)
        term = jnp.einsum("bqd,de->bqe", ctx.astype(jnp.bfloat16), wo[lo:hi, :],
                          preferred_element_type=jnp.float32)
        out = term if out is None else out + term
    return out + bo


if __name__ == "__main__":
    # Shapes consistent with the module: seq = max_len = 8, embed = 32, n_heads = 1.
    # Batch sized so the 1-D grid gives each TensorCore several pipelined steps
    # (B=128, Bt=16 -> grid of 8, i.e. 4 steps per core on a 2-TC chip).
    B, L, E = 128, 8, 32
    n_heads = 1

    key = jax.random.PRNGKey(0)
    k_inw, k_inb, k_ow, k_ob, k_x, k_m = jax.random.split(key, 6)

    # nn.MultiheadAttention parameters (deterministic synthetic init):
    # in_proj_weight (3E, E), in_proj_bias (3E,), out_proj (E, E) + (E,).
    in_proj_w = jax.random.normal(k_inw, (3 * E, E), jnp.float32) * (1.0 / math.sqrt(E))
    in_proj_b = jax.random.normal(k_inb, (3 * E,), jnp.float32) * 0.02
    out_proj_w = jax.random.normal(k_ow, (E, E), jnp.float32) * (1.0 / math.sqrt(E))
    out_proj_b = jax.random.normal(k_ob, (E,), jnp.float32) * 0.02

    # Pre-transpose Linear weights (kernel computes y = x @ W + b), fuse QKV;
    # weights in bf16 (MXU-native), biases stay f32 (added after f32 accumulation).
    w_qkv = in_proj_w.T.astype(jnp.bfloat16)                 # (E, 3E) = [Wq^T | Wk^T | Wv^T]
    b_qkv = in_proj_b.reshape(1, 3 * E).astype(jnp.float32)
    wo = out_proj_w.T.astype(jnp.bfloat16)                   # (E, E)
    bo = out_proj_b.reshape(1, E).astype(jnp.float32)
    params = (w_qkv, b_qkv, wo, bo)

    pos_encoding = jnp.asarray(_positional_encoding(L, E))   # (1, L, E)

    embeddings = jax.random.normal(k_x, (B, L, E), jnp.float32)
    mask = (jax.random.uniform(k_m, (B, L)) > 0.3).astype(jnp.float32)

    out, _ = attention_encoder_forward(embeddings, mask, params, pos_encoding, n_heads)
    out = jax.block_until_ready(out)

    ref = reference_forward(embeddings, mask, params, pos_encoding, n_heads)
    # Kernel and reference both use bf16 inputs with f32 accumulation; the residual
    # difference comes from the approximate EUP reciprocal and op ordering.
    np.testing.assert_allclose(np.asarray(out), np.asarray(ref), rtol=2e-2, atol=2e-2)

    print("KERNEL_OK")
</pallas_src>

<mosaic_0001>
module attributes {stable_mosaic.version = 11 : i64} {
  func.func @kernel(%arg0: i32, %arg1: memref<128x32xbf16, #tpu.memory_space<vmem>>, %arg2: memref<128x1xf32, #tpu.memory_space<vmem>>, %arg3: memref<1x128xf32, #tpu.memory_space<vmem>>, %arg4: memref<128x128xf32, #tpu.memory_space<vmem>>, %arg5: memref<128x32xbf16, #tpu.memory_space<vmem>>, %arg6: memref<32x96xbf16, #tpu.memory_space<vmem>>, %arg7: memref<1x96xf32, #tpu.memory_space<vmem>>, %arg8: memref<32x32xbf16, #tpu.memory_space<vmem>>, %arg9: memref<1x32xf32, #tpu.memory_space<vmem>>, %arg10: memref<128x32xf32, #tpu.memory_space<vmem>>) attributes {dimension_semantics = [#tpu.dimension_semantics<parallel>], iteration_bounds = array<i64: 8>, scalar_prefetch = 0 : i64, scratch_operands = 0 : i64, tpu.core_type = #tpu.core_type<tc>, window_params = [{pipeline_mode = #tpu.pipeline_mode<synchronous>, transform_indices = @transform_0, window_bounds = array<i64: 128, 32>}, {transform_indices = @transform_1, window_bounds = array<i64: 128, 1>}, {transform_indices = @transform_2, window_bounds = array<i64: 1, 128>}, {pipeline_mode = #tpu.pipeline_mode<synchronous>, transform_indices = @transform_3, window_bounds = array<i64: 128, 128>}, {transform_indices = @transform_4, window_bounds = array<i64: 128, 32>}, {pipeline_mode = #tpu.pipeline_mode<synchronous>, transform_indices = @transform_5, window_bounds = array<i64: 32, 96>}, {pipeline_mode = #tpu.pipeline_mode<synchronous>, transform_indices = @transform_6, window_bounds = array<i64: 1, 96>}, {pipeline_mode = #tpu.pipeline_mode<synchronous>, transform_indices = @transform_7, window_bounds = array<i64: 32, 32>}, {pipeline_mode = #tpu.pipeline_mode<synchronous>, transform_indices = @transform_8, window_bounds = array<i64: 1, 32>}, {transform_indices = @transform_9, window_bounds = array<i64: 128, 32>}]} {
    %c0 = arith.constant 0 : index
    %c0_0 = arith.constant 0 : index
    %0 = vector.load %arg5[%c0, %c0_0] : memref<128x32xbf16, #tpu.memory_space<vmem>>, vector<128x32xbf16>
    %c0_1 = arith.constant 0 : index
    %c0_2 = arith.constant 0 : index
    %1 = vector.load %arg1[%c0_1, %c0_2] : memref<128x32xbf16, #tpu.memory_space<vmem>>, vector<128x32xbf16>
    %2 = arith.addf %0, %1 : vector<128x32xbf16>
    %c0_3 = arith.constant 0 : index
    %c0_4 = arith.constant 0 : index
    %3 = vector.load %arg6[%c0_3, %c0_4] : memref<32x96xbf16, #tpu.memory_space<vmem>>, vector<32x96xbf16>
    %cst = arith.constant dense<0.000000e+00> : vector<128x96xf32>
    %4 = tpu.matmul %2, %3, %cst {dimension_numbers = #tpu.dot_dimension_numbers<[1], [0], [0], [1], [0, 0, 1, 1], [], []>} : vector<128x32xbf16>, vector<32x96xbf16>, vector<128x96xf32> -> vector<128x96xf32>
    %c0_5 = arith.constant 0 : index
    %c0_6 = arith.constant 0 : index
    %5 = vector.load %arg7[%c0_5, %c0_6] : memref<1x96xf32, #tpu.memory_space<vmem>>, vector<1x96xf32>
    %6 = vector.broadcast %5 : vector<1x96xf32> to vector<128x96xf32>
    %7 = arith.addf %4, %6 : vector<128x96xf32>
    %c0_7 = arith.constant 0 : index
    %c0_8 = arith.constant 0 : index
    %8 = vector.load %arg2[%c0_7, %c0_8] : memref<128x1xf32, #tpu.memory_space<vmem>>, vector<128x1xf32>
    %c0_9 = arith.constant 0 : index
    %c0_10 = arith.constant 0 : index
    %9 = vector.load %arg3[%c0_9, %c0_10] : memref<1x128xf32, #tpu.memory_space<vmem>>, vector<1x128xf32>
    %10 = vector.broadcast %8 : vector<128x1xf32> to vector<128x128xf32>
    %11 = vector.broadcast %9 : vector<1x128xf32> to vector<128x128xf32>
    %12 = arith.mulf %10, %11 : vector<128x128xf32>
    %c0_11 = arith.constant 0 : index
    %c0_12 = arith.constant 0 : index
    %13 = vector.load %arg4[%c0_11, %c0_12] : memref<128x128xf32, #tpu.memory_space<vmem>>, vector<128x128xf32>
    %14 = arith.addf %12, %13 : vector<128x128xf32>
    %c0_13 = arith.constant 0 : index
    %c0_14 = arith.constant 0 : index
    %15 = vector.load %arg8[%c0_13, %c0_14] : memref<32x32xbf16, #tpu.memory_space<vmem>>, vector<32x32xbf16>
    %16 = vector.extract_strided_slice %7 {offsets = [0, 0], sizes = [128, 32], strides = [1, 1]} : vector<128x96xf32> to vector<128x32xf32>
    %17 = arith.truncf %16 : vector<128x32xf32> to vector<128x32xbf16>
    %18 = vector.extract_strided_slice %7 {offsets = [0, 32], sizes = [128, 32], strides = [1, 1]} : vector<128x96xf32> to vector<128x32xf32>
    %19 = arith.truncf %18 : vector<128x32xf32> to vector<128x32xbf16>
    %20 = vector.extract_strided_slice %7 {offsets = [0, 64], sizes = [128, 32], strides = [1, 1]} : vector<128x96xf32> to vector<128x32xf32>
    %21 = arith.truncf %20 : vector<128x32xf32> to vector<128x32xbf16>
    %cst_15 = arith.constant dense<0.000000e+00> : vector<128x128xf32>
    %22 = tpu.matmul %17, %19, %cst_15 {dimension_numbers = #tpu.dot_dimension_numbers<[1], [1], [0], [0], [0, 0, 1, 0], [], []>} : vector<128x32xbf16>, vector<128x32xbf16>, vector<128x128xf32> -> vector<128x128xf32>
    %cst_16 = arith.constant 0.176776692 : f32
    %23 = vector.broadcast %cst_16 : f32 to vector<128x128xf32>
    %24 = arith.mulf %22, %23 : vector<128x128xf32>
    %25 = arith.addf %24, %14 : vector<128x128xf32>
    %cst_17 = arith.constant dense<0xFF800000> : vector<128xf32>
    %26 = vector.multi_reduction <maximumf>, %25, %cst_17 [1] : vector<128x128xf32> to vector<128xf32>
    %27 = vector.shape_cast %26 : vector<128xf32> to vector<128x1xf32>
    %28 = vector.broadcast %27 : vector<128x1xf32> to vector<128x128xf32>
    %29 = arith.subf %25, %28 : vector<128x128xf32>
    %30 = math.exp %29 : vector<128x128xf32>
    %cst_18 = arith.constant dense<0.000000e+00> : vector<128xf32>
    %31 = vector.multi_reduction <add>, %30, %cst_18 [1] : vector<128x128xf32> to vector<128xf32>
    %32 = vector.shape_cast %31 : vector<128xf32> to vector<128x1xf32>
    %33 = tpu.reciprocal %32 {approx = true} : vector<128x1xf32> -> vector<128x1xf32>
    %34 = vector.broadcast %33 : vector<128x1xf32> to vector<128x128xf32>
    %35 = arith.mulf %30, %34 : vector<128x128xf32>
    %36 = arith.truncf %35 : vector<128x128xf32> to vector<128x128xbf16>
    %cst_19 = arith.constant dense<0.000000e+00> : vector<128x32xf32>
    %37 = tpu.matmul %36, %21, %cst_19 {dimension_numbers = #tpu.dot_dimension_numbers<[1], [0], [0], [1], [0, 0, 1, 1], [], []>} : vector<128x128xbf16>, vector<128x32xbf16>, vector<128x32xf32> -> vector<128x32xf32>
    %38 = arith.truncf %37 : vector<128x32xf32> to vector<128x32xbf16>
    %cst_20 = arith.constant dense<0.000000e+00> : vector<128x32xf32>
    %39 = tpu.matmul %38, %15, %cst_20 {dimension_numbers = #tpu.dot_dimension_numbers<[1], [0], [0], [1], [0, 0, 1, 1], [], []>} : vector<128x32xbf16>, vector<32x32xbf16>, vector<128x32xf32> -> vector<128x32xf32>
    %c0_21 = arith.constant 0 : index
    %c0_22 = arith.constant 0 : index
    %40 = vector.load %arg9[%c0_21, %c0_22] : memref<1x32xf32, #tpu.memory_space<vmem>>, vector<1x32xf32>
    %41 = vector.broadcast %40 : vector<1x32xf32> to vector<128x32xf32>
    %42 = arith.addf %39, %41 : vector<128x32xf32>
    %c0_23 = arith.constant 0 : index
    %c0_24 = arith.constant 0 : index
    %43 = vector.load %arg10[%c0_23, %c0_24] : memref<128x32xf32, #tpu.memory_space<vmem>>, vector<128x32xf32>
    tpu.vector_store %arg10[%c0_23, %c0_24], %42 {strides = array<i32>} : memref<128x32xf32, #tpu.memory_space<vmem>>, vector<128x32xf32>,
    return
  }
  func.func @transform_0(%arg0: i32) -> (i32, i32) {
    %c0_i32 = arith.constant 0 : i32
    %c0_i32_0 = arith.constant 0 : i32
    %c0_i32_1 = arith.constant 0 : i32
    return %c0_i32, %c0_i32_0 : i32, i32
  }
  func.func @transform_1(%arg0: i32) -> (i32, i32) {
    %c0_i32 = arith.constant 0 : i32
    %c0_i32_0 = arith.constant 0 : i32
    return %arg0, %c0_i32 : i32, i32
  }
  func.func @transform_2(%arg0: i32) -> (i32, i32) {
    %c0_i32 = arith.constant 0 : i32
    %c0_i32_0 = arith.constant 0 : i32
    return %c0_i32, %arg0 : i32, i32
  }
  func.func @transform_3(%arg0: i32) -> (i32, i32) {
    %c0_i32 = arith.constant 0 : i32
    %c0_i32_0 = arith.constant 0 : i32
    %c0_i32_1 = arith.constant 0 : i32
    return %c0_i32, %c0_i32_0 : i32, i32
  }
  func.func @transform_4(%arg0: i32) -> (i32, i32) {
    %c0_i32 = arith.constant 0 : i32
    %c0_i32_0 = arith.constant 0 : i32
    return %arg0, %c0_i32 : i32, i32
  }
  func.func @transform_5(%arg0: i32) -> (i32, i32) {
    %c0_i32 = arith.constant 0 : i32
    %c0_i32_0 = arith.constant 0 : i32
    %c0_i32_1 = arith.constant 0 : i32
    return %c0_i32, %c0_i32_0 : i32, i32
  }
  func.func @transform_6(%arg0: i32) -> (i32, i32) {
    %c0_i32 = arith.constant 0 : i32
    %c0_i32_0 = arith.constant 0 : i32
    %c0_i32_1 = arith.constant 0 : i32
    return %c0_i32, %c0_i32_0 : i32, i32
  }
  func.func @transform_7(%arg0: i32) -> (i32, i32) {
    %c0_i32 = arith.constant 0 : i32
    %c0_i32_0 = arith.constant 0 : i32
    %c0_i32_1 = arith.constant 0 : i32
    return %c0_i32, %c0_i32_0 : i32, i32
  }
  func.func @transform_8(%arg0: i32) -> (i32, i32) {
    %c0_i32 = arith.constant 0 : i32
    %c0_i32_0 = arith.constant 0 : i32
    %c0_i32_1 = arith.constant 0 : i32
    return %c0_i32, %c0_i32_0 : i32, i32
  }
  func.func @transform_9(%arg0: i32) -> (i32, i32) {
    %c0_i32 = arith.constant 0 : i32
    %c0_i32_0 = arith.constant 0 : i32
    return %arg0, %c0_i32 : i32, i32
  }
}

</mosaic_0001>

<llo_original>
// kernel: tpu_custom_call.1
$region0: #{tpu_custom_call.1}
  #allocation0 [shape = 'u32[]', space=smem, size = 0x4, offset = 0x4, fixed_abs, tag = 'smem constant byte address 0x4 - core index']
  #allocation1 [shape = 'u32[72,128]{1,0:T(1,128)}', space=vmem, size = 0x9000, scoped, tag = 'internal scratch']
  %s0 = inlined_call_operand.vmem [shape: bf16[128,32], index: 0, kind: input, shape index: {}]
  %s1 = inlined_call_operand.vmem [shape: f32[1024,1], index: 1, kind: input, shape index: {}]
  %s2 = inlined_call_operand.vmem [shape: f32[1,1024], index: 2, kind: input, shape index: {}]
  %s3 = inlined_call_operand.vmem [shape: f32[128,128], index: 3, kind: input, shape index: {}]
  %s4 = inlined_call_operand.vmem [shape: bf16[1024,32], index: 4, kind: input, shape index: {}]
  %s5 = inlined_call_operand.vmem [shape: bf16[32,96], index: 5, kind: input, shape index: {}]
  %s6 = inlined_call_operand.vmem [shape: f32[1,96], index: 6, kind: input, shape index: {}]
  %s7 = inlined_call_operand.vmem [shape: bf16[32,32], index: 7, kind: input, shape index: {}]
  %s8 = inlined_call_operand.vmem [shape: f32[1,32], index: 8, kind: input, shape index: {}]
  %s9 = inlined_call_operand.vmem [shape: f32[1024,32], index: 9, kind: output, shape index: {}]
  %s10 = sld [smem:[#allocation0]]
  $region69: #{tpu_custom_call.1} parent=0
    _
  %s12 = ssub.s32 1, %s10
  %s13 = scalar_select 0, %s12, %s10
  loop: start=0, step=1, limit=10
  $region2: #{tpu_custom_call.1} parent=0 // loop_pre_header
    _
  $region3: #{tpu_custom_call.1} parent=0 // loop_header
    %s15 = sphi 0, %s19
    %p16 = scmp.ge.s32.totalorder %s15, 10
    %s23 = sphi 0, %s23
    %s25 = sphi 0, %s23
    %s26 = sphi 0, %s25
    %s40 = sphi 0, %s26
    %s46 = sphi 0, %s48
    %s49 = sphi 0, %s46
    %s50 = sphi 0, %s49
    %s66 = sphi 0, %s50
    %s72 = sphi 0, %s74
    %s75 = sphi 0, %s72
    %s76 = sphi 0, %s75
    %s92 = sphi 0, %s76
    %s96 = sphi 0, %s96
    %s98 = sphi 0, %s96
    %s99 = sphi 0, %s98
    %s113 = sphi 0, %s99
    %s119 = sphi 0, %s121
    %s122 = sphi 0, %s119
    %s123 = sphi 0, %s122
    %s139 = sphi 0, %s123
    %s143 = sphi 0, %s143
    %s145 = sphi 0, %s143
    %s146 = sphi 0, %s145
    %s160 = sphi 0, %s146
    %s164 = sphi 0, %s164
    %s166 = sphi 0, %s164
    %s167 = sphi 0, %s166
    %s181 = sphi 0, %s167
    %s185 = sphi 0, %s185
    %s187 = sphi 0, %s185
    %s188 = sphi 0, %s187
    %s202 = sphi 0, %s188
    %s206 = sphi 0, %s206
    %s208 = sphi 0, %s206
    %s209 = sphi 0, %s208
    %s223 = sphi 0, %s209
    %s229 = sphi 0, %s231
    %s232 = sphi 0, %s229
    %s233 = sphi 0, %s232
    %s249 = sphi 0, %s233
  $region4: #{tpu_custom_call.1} parent=0 // loop_header_branch
    %18 = sbr.rel (%p16) target = $region8
  $region5: #{tpu_custom_call.1} parent=0 // loop_body
    %s20 = ssub.s32 %s15, 1
    %s21 = ssub.s32 %s15, 2
    %s22 = sadd.s32 %s15, 1
    %s24 = sadd.s32 %s23, 1
    %p27 = scmp.eq.s32.totalorder %s15, 7
    %p28 = scmp.ne.s32.totalorder %s23, %s25
    %p29 = scmp.eq.s32.totalorder %s15, 0
    %p30 = por %p28, %p29
    %p31 = scmp.ne.s32.totalorder %s23, %s25
    %p32 = scmp.eq.s32.totalorder %s20, 7
    %p33 = por %p31, %p32
    %p34 = scmp.ne.s32.totalorder %s25, %s26
    %p35 = scmp.eq.s32.totalorder %s20, 0
    %p36 = por %p34, %p35
    %p37 = scmp.ne.s32.totalorder %s25, %s26
    %p38 = scmp.eq.s32.totalorder %s21, 7
    %p39 = por %p37, %p38
    %p41 = scmp.ne.s32.totalorder %s26, %s40
    %p42 = scmp.eq.s32.totalorder %s21, 0
    %p43 = por %p41, %p42
    %s44 = ssub.s32 %s15, %s22
    %p45 = scmp.eq.s32.totalorder %s44, 0
    %s47 = sadd.s32 %s46, 1
    %s48 = scalar_select %p45, %s46, %s47
    %p51 = pneg %p45
    %p52 = scmp.eq.s32.totalorder %s15, 7
    %p53 = por %p51, %p52
    %p54 = scmp.ne.s32.totalorder %s46, %s49
    %p55 = scmp.eq.s32.totalorder %s15, 0
    %p56 = por %p54, %p55
    %p57 = scmp.ne.s32.totalorder %s46, %s49
    %p58 = scmp.eq.s32.totalorder %s20, 7
    %p59 = por %p57, %p58
    %p60 = scmp.ne.s32.totalorder %s49, %s50
    %p61 = scmp.eq.s32.totalorder %s20, 0
    %p62 = por %p60, %p61
    %p63 = scmp.ne.s32.totalorder %s49, %s50
    %p64 = scmp.eq.s32.totalorder %s21, 7
    %p65 = por %p63, %p64
    %p67 = scmp.ne.s32.totalorder %s50, %s66
    %p68 = scmp.eq.s32.totalorder %s21, 0
    %p69 = por %p67, %p68
    %s70 = ssub.s32 %s15, %s22
    %p71 = scmp.eq.s32.totalorder %s70, 0
    %s73 = sadd.s32 %s72, 1
    %s74 = scalar_select %p71, %s72, %s73
    %p77 = pneg %p71
    %p78 = scmp.eq.s32.totalorder %s15, 7
    %p79 = por %p77, %p78
    %p80 = scmp.ne.s32.totalorder %s72, %s75
    %p81 = scmp.eq.s32.totalorder %s15, 0
    %p82 = por %p80, %p81
    %p83 = scmp.ne.s32.totalorder %s72, %s75
    %p84 = scmp.eq.s32.totalorder %s20, 7
    %p85 = por %p83, %p84
    %p86 = scmp.ne.s32.totalorder %s75, %s76
    %p87 = scmp.eq.s32.totalorder %s20, 0
    %p88 = por %p86, %p87
    %p89 = scmp.ne.s32.totalorder %s75, %s76
    %p90 = scmp.eq.s32.totalorder %s21, 7
    %p91 = por %p89, %p90
    %p93 = scmp.ne.s32.totalorder %s76, %s92
    %p94 = scmp.eq.s32.totalorder %s21, 0
    %p95 = por %p93, %p94
    %s97 = sadd.s32 %s96, 1
    %p100 = scmp.eq.s32.totalorder %s15, 7
    %p101 = scmp.ne.s32.totalorder %s96, %s98
    %p102 = scmp.eq.s32.totalorder %s15, 0
    %p103 = por %p101, %p102
    %p104 = scmp.ne.s32.totalorder %s96, %s98
    %p105 = scmp.eq.s32.totalorder %s20, 7
    %p106 = por %p104, %p105
    %p107 = scmp.ne.s32.totalorder %s98, %s99
    %p108 = scmp.eq.s32.totalorder %s20, 0
    %p109 = por %p107, %p108
    %p110 = scmp.ne.s32.totalorder %s98, %s99
    %p111 = scmp.eq.s32.totalorder %s21, 7
    %p112 = por %p110, %p111
    %p114 = scmp.ne.s32.totalorder %s99, %s113
    %p115 = scmp.eq.s32.totalorder %s21, 0
    %p116 = por %p114, %p115
    %s117 = ssub.s32 %s15, %s22
    %p118 = scmp.eq.s32.totalorder %s117, 0
    %s120 = sadd.s32 %s119, 1
    %s121 = scalar_select %p118, %s119, %s120
    %p124 = pneg %p118
    %p125 = scmp.eq.s32.totalorder %s15, 7
    %p126 = por %p124, %p125
    %p127 = scmp.ne.s32.totalorder %s119, %s122
    %p128 = scmp.eq.s32.totalorder %s15, 0
    %p129 = por %p127, %p128
    %p130 = scmp.ne.s32.totalorder %s119, %s122
    %p131 = scmp.eq.s32.totalorder %s20, 7
    %p132 = por %p130, %p131
    %p133 = scmp.ne.s32.totalorder %s122, %s123
    %p134 = scmp.eq.s32.totalorder %s20, 0
    %p135 = por %p133, %p134
    %p136 = scmp.ne.s32.totalorder %s122, %s123
    %p137 = scmp.eq.s32.totalorder %s21, 7
    %p138 = por %p136, %p137
    %p140 = scmp.ne.s32.totalorder %s123, %s139
    %p141 = scmp.eq.s32.totalorder %s21, 0
    %p142 = por %p140, %p141
    %s144 = sadd.s32 %s143, 1
    %p147 = scmp.eq.s32.totalorder %s15, 7
    %p148 = scmp.ne.s32.totalorder %s143, %s145
    %p149 = scmp.eq.s32.totalorder %s15, 0
    %p150 = por %p148, %p149
    %p151 = scmp.ne.s32.totalorder %s143, %s145
    %p152 = scmp.eq.s32.totalorder %s20, 7
    %p153 = por %p151, %p152
    %p154 = scmp.ne.s32.totalorder %s145, %s146
    %p155 = scmp.eq.s32.totalorder %s20, 0
    %p156 = por %p154, %p155
    %p157 = scmp.ne.s32.totalorder %s145, %s146
    %p158 = scmp.eq.s32.totalorder %s21, 7
    %p159 = por %p157, %p158
    %p161 = scmp.ne.s32.totalorder %s146, %s160
    %p162 = scmp.eq.s32.totalorder %s21, 0
    %p163 = por %p161, %p162
    %s165 = sadd.s32 %s164, 1
    %p168 = scmp.eq.s32.totalorder %s15, 7
    %p169 = scmp.ne.s32.totalorder %s164, %s166
    %p170 = scmp.eq.s32.totalorder %s15, 0
    %p171 = por %p169, %p170
    %p172 = scmp.ne.s32.totalorder %s164, %s166
    %p173 = scmp.eq.s32.totalorder %s20, 7
    %p174 = por %p172, %p173
    %p175 = scmp.ne.s32.totalorder %s166, %s167
    %p176 = scmp.eq.s32.totalorder %s20, 0
    %p177 = por %p175, %p176
    %p178 = scmp.ne.s32.totalorder %s166, %s167
    %p179 = scmp.eq.s32.totalorder %s21, 7
    %p180 = por %p178, %p179
    %p182 = scmp.ne.s32.totalorder %s167, %s181
    %p183 = scmp.eq.s32.totalorder %s21, 0
    %p184 = por %p182, %p183
    %s186 = sadd.s32 %s185, 1
    %p189 = scmp.eq.s32.totalorder %s15, 7
    %p190 = scmp.ne.s32.totalorder %s185, %s187
    %p191 = scmp.eq.s32.totalorder %s15, 0
    %p192 = por %p190, %p191
    %p193 = scmp.ne.s32.totalorder %s185, %s187
    %p194 = scmp.eq.s32.totalorder %s20, 7
    %p195 = por %p193, %p194
    %p196 = scmp.ne.s32.totalorder %s187, %s188
    %p197 = scmp.eq.s32.totalorder %s20, 0
    %p198 = por %p196, %p197
    %p199 = scmp.ne.s32.totalorder %s187, %s188
    %p200 = scmp.eq.s32.totalorder %s21, 7
    %p201 = por %p199, %p200
    %p203 = scmp.ne.s32.totalorder %s188, %s202
    %p204 = scmp.eq.s32.totalorder %s21, 0
    %p205 = por %p203, %p204
    %s207 = sadd.s32 %s206, 1
    %p210 = scmp.eq.s32.totalorder %s15, 7
    %p211 = scmp.ne.s32.totalorder %s206, %s208
    %p212 = scmp.eq.s32.totalorder %s15, 0
    %p213 = por %p211, %p212
    %p214 = scmp.ne.s32.totalorder %s206, %s208
    %p215 = scmp.eq.s32.totalorder %s20, 7
    %p216 = por %p214, %p215
    %p217 = scmp.ne.s32.totalorder %s208, %s209
    %p218 = scmp.eq.s32.totalorder %s20, 0
    %p219 = por %p217, %p218
    %p220 = scmp.ne.s32.totalorder %s208, %s209
    %p221 = scmp.eq.s32.totalorder %s21, 7
    %p222 = por %p220, %p221
    %p224 = scmp.ne.s32.totalorder %s209, %s223
    %p225 = scmp.eq.s32.totalorder %s21, 0
    %p226 = por %p224, %p225
    %s227 = ssub.s32 %s15, %s22
    %p228 = scmp.eq.s32.totalorder %s227, 0
    %s230 = sadd.s32 %s229, 1
    %s231 = scalar_select %p228, %s229, %s230
    %p234 = pneg %p228
    %p235 = scmp.eq.s32.totalorder %s15, 7
    %p236 = por %p234, %p235
    %p237 = scmp.ne.s32.totalorder %s229, %s232
    %p238 = scmp.eq.s32.totalorder %s15, 0
    %p239 = por %p237, %p238
    %p240 = scmp.ne.s32.totalorder %s229, %s232
    %p241 = scmp.eq.s32.totalorder %s20, 7
    %p242 = por %p240, %p241
    %p243 = scmp.ne.s32.totalorder %s232, %s233
    %p244 = scmp.eq.s32.totalorder %s20, 0
    %p245 = por %p243, %p244
    %p246 = scmp.ne.s32.totalorder %s232, %s233
    %p247 = scmp.eq.s32.totalorder %s21, 7
    %p248 = por %p246, %p247
    %p250 = scmp.ne.s32.totalorder %s233, %s249
    %p251 = scmp.eq.s32.totalorder %s21, 0
    %p252 = por %p250, %p251
    %p253 = scmp.le.s32.totalorder 1, %s15
    %p254 = scmp.lt.s32.totalorder %s15, 9
    %p255 = pnand %p253, %p254
    %p256 = pneg %p255
    // Predicated region
    $region9: #{tpu_custom_call.1} parent=5 // pred_check
      _
    $region10: #{tpu_custom_call.1} parent=5 // pred_check_branch
      %258 = sbr.rel (%p255) target = $region12
    $region11: #{tpu_custom_call.1} parent=5 // pred_region
      %s259 = ssub.s32 %s15, 1
      // Predicated region
      $region13: #{tpu_custom_call.1} parent=11 // pred_check
        %p260 = pneg %p36
      $region14: #{tpu_custom_call.1} parent=11 // pred_check_branch
        %262 = sbr.rel (%p260) target = $region16
      $region15: #{tpu_custom_call.1} parent=11 // pred_region
        _
      $region16: #{tpu_custom_call.1} parent=11 // pred_fallthru
        _
      // Predicated region
      $region17: #{tpu_custom_call.1} parent=11 // pred_check
        %p263 = pneg %p109
      $region18: #{tpu_custom_call.1} parent=11 // pred_check_branch
        %265 = sbr.rel (%p263) target = $region20
      $region19: #{tpu_custom_call.1} parent=11 // pred_region
        _
      $region20: #{tpu_custom_call.1} parent=11 // pred_fallthru
        _
      // Predicated region
      $region21: #{tpu_custom_call.1} parent=11 // pred_check
        %p266 = pneg %p156
      $region22: #{tpu_custom_call.1} parent=11 // pred_check_branch
        %268 = sbr.rel (%p266) target = $region24
      $region23: #{tpu_custom_call.1} parent=11 // pred_region
        _
      $region24: #{tpu_custom_call.1} parent=11 // pred_fallthru
        _
      // Predicated region
      $region25: #{tpu_custom_call.1} parent=11 // pred_check
        %p269 = pneg %p177
      $region26: #{tpu_custom_call.1} parent=11 // pred_check_branch
        %271 = sbr.rel (%p269) target = $region28
      $region27: #{tpu_custom_call.1} parent=11 // pred_region
        _
      $region28: #{tpu_custom_call.1} parent=11 // pred_fallthru
        _
      // Predicated region
      $region29: #{tpu_custom_call.1} parent=11 // pred_check
        %p272 = pneg %p198
      $region30: #{tpu_custom_call.1} parent=11 // pred_check_branch
        %274 = sbr.rel (%p272) target = $region32
      $region31: #{tpu_custom_call.1} parent=11 // pred_region
        _
      $region32: #{tpu_custom_call.1} parent=11 // pred_fallthru
        _
      // Predicated region
      $region33: #{tpu_custom_call.1} parent=11 // pred_check
        %p275 = pneg %p219
      $region34: #{tpu_custom_call.1} parent=11 // pred_check_branch
        %277 = sbr.rel (%p275) target = $region36
      $region35: #{tpu_custom_call.1} parent=11 // pred_region
        _
      $region36: #{tpu_custom_call.1} parent=11 // pred_fallthru
        _
    $region12: #{tpu_custom_call.1} parent=5 // pred_fallthru
      _
    %p278 = scmp.lt.s32.totalorder %s15, 8
    // Predicated region
    $region37: #{tpu_custom_call.1} parent=5 // pred_check
      %p279 = pneg %p278
    $region38: #{tpu_custom_call.1} parent=5 // pred_check_branch
      %281 = sbr.rel (%p279) target = $region40
    $region39: #{tpu_custom_call.1} parent=5 // pred_region
      // Predicated region
      $region41: #{tpu_custom_call.1} parent=39 // pred_check
        %p282 = pneg %p56
      $region42: #{tpu_custom_call.1} parent=39 // pred_check_branch
        %284 = sbr.rel (%p282) target = $region44
      $region43: #{tpu_custom_call.1} parent=39 // pred_region
        %s285 = smul.u32 16, %s15
        %p286 = scmp.lt.s32.totalorder %s285, 127
        %s287 = scalar_select %p286, %s285, 127
        %s288 = smul.addr %s287, 8
        %s289 = scalar_lea.vmem %s1, %s288
        %s290 = smul.u32 16, %s15
      $region44: #{tpu_custom_call.1} parent=39 // pred_fallthru
        _
      // Predicated region
      $region45: #{tpu_custom_call.1} parent=39 // pred_check
        %p291 = pneg %p82
      $region46: #{tpu_custom_call.1} parent=39 // pred_check_branch
        %293 = sbr.rel (%p291) target = $region48
      $region47: #{tpu_custom_call.1} parent=39 // pred_region
        %p294 = scmp.lt.s32.totalorder %s15, 7
        %s295 = scalar_select %p294, %s15, 7
        %s296 = scalar_lea.vmem %s2, %s295
      $region48: #{tpu_custom_call.1} parent=39 // pred_fallthru
        _
      // Predicated region
      $region49: #{tpu_custom_call.1} parent=39 // pred_check
        %p297 = pneg %p129
      $region50: #{tpu_custom_call.1} parent=39 // pred_check_branch
        %299 = sbr.rel (%p297) target = $region52
      $region51: #{tpu_custom_call.1} parent=39 // pred_region
        %s300 = smul.u32 16, %s15
        %p301 = scmp.lt.s32.totalorder %s300, 127
        %s302 = scalar_select %p301, %s300, 127
        %s303 = smul.addr %s302, 4
        %s304 = scalar_lea.vmem %s4, %s303
        %s305 = smul.u32 16, %s15
      $region52: #{tpu_custom_call.1} parent=39 // pred_fallthru
        _
    $region40: #{tpu_custom_call.1} parent=5 // pred_fallthru
      _
    %p306 = scmp.le.s32.totalorder 1, %s15
    %p307 = scmp.lt.s32.totalorder %s15, 9
    %p308 = pnand %p306, %p307
    %p309 = pneg %p308
    // Predicated region
    $region53: #{tpu_custom_call.1} parent=5 // pred_check
      _
    $region54: #{tpu_custom_call.1} parent=5 // pred_check_branch
      %311 = sbr.rel (%p308) target = $region56
    $region55: #{tpu_custom_call.1} parent=5 // pred_region
      %s312 = ssub.s32 %s15, 1
      %p313 = pneg %p36
      %p314 = pneg %p33
      %s315 = smul.u32 16, %s20
      %p316 = scmp.lt.s32.totalorder %s315, 127
      %s317 = scalar_select %p316, %s315, 127
      %s318 = smul.addr %s317, 8
      %s319 = scalar_lea.vmem %s1, %s318
      %p320 = pneg %p62
      %p321 = pneg %p59
      %p322 = scmp.lt.s32.totalorder %s20, 7
      %s323 = scalar_select %p322, %s20, 7
      %s324 = scalar_lea.vmem %s2, %s323
      %p325 = pneg %p88
      %p326 = pneg %p85
      %p327 = pneg %p109
      %p328 = pneg %p106
      %s329 = smul.u32 16, %s20
      %p330 = scmp.lt.s32.totalorder %s329, 127
      %s331 = scalar_select %p330, %s329, 127
      %s332 = smul.addr %s331, 4
      %s333 = scalar_lea.vmem %s4, %s332
      %p334 = pneg %p135
      %p335 = pneg %p132
      %p336 = pneg %p156
      %p337 = pneg %p153
      %p338 = pneg %p177
      %p339 = pneg %p174
      %p340 = pneg %p198
      %p341 = pneg %p195
      %p342 = pneg %p219
      %p343 = pneg %p216
      %p344 = pneg %p245
      %p345 = pneg %p242
      %s346 = smul.u32 16, %s20
      %p347 = scmp.lt.s32.totalorder %s346, 127
      %s348 = scalar_select %p347, %s346, 127
      %s349 = smul.addr %s348, 8
      %s350 = scalar_lea.vmem %s9, %s349
      %s351 = smul.u32 16, %s20
      %p352 = scmp.lt.s32.totalorder %s351, 127
      %s353 = scalar_select %p352, %s351, 127
      %s354 = smul.addr %s353, 8
      %s355 = scalar_lea.vmem %s1, %s354
      %s356 = smul.u32 16, %s20
      %p357 = scmp.lt.s32.totalorder %s20, 7
      %s358 = scalar_select %p357, %s20, 7
      %s359 = scalar_lea.vmem %s2, %s358
      %s360 = smul.u32 16, %s20
      %p361 = scmp.lt.s32.totalorder %s360, 127
      %s362 = scalar_select %p361, %s360, 127
      %s363 = smul.addr %s362, 4
      %s364 = scalar_lea.vmem %s4, %s363
      %s365 = smul.u32 16, %s20
      %s366 = smul.u32 16, %s20
      %p367 = scmp.lt.s32.totalorder %s366, 127
      %s368 = scalar_select %p367, %s366, 127
      %s369 = smul.addr %s368, 8
      %s370 = scalar_lea.vmem %s9, %s369
      %s371 = smul.u32 16, %s20
      %v373 = vld [vmem:[%s364] sm:$0xf]
      %v374 = vld [vmem:[%s364 + $0x4] sm:$0xf]
      %v375 = vld [vmem:[%s364 + $0x8] sm:$0xf]
      %v376 = vld [vmem:[%s364 + $0xc] sm:$0xf]
      %v377 = vld [vmem:[%s364 + $0x10] sm:$0xf]
      %v378 = vld [vmem:[%s364 + $0x14] sm:$0xf]
      %v379 = vld [vmem:[%s364 + $0x18] sm:$0xf]
      %v380 = vld [vmem:[%s364 + $0x1c] sm:$0xf]
      %v381 = vld [vmem:[%s364 + $0x20] sm:$0xf]
      %v382 = vld [vmem:[%s364 + $0x24] sm:$0xf]
      %v383 = vld [vmem:[%s364 + $0x28] sm:$0xf]
      %v384 = vld [vmem:[%s364 + $0x2c] sm:$0xf]
      %v385 = vld [vmem:[%s364 + $0x30] sm:$0xf]
      %v386 = vld [vmem:[%s364 + $0x34] sm:$0xf]
      %v387 = vld [vmem:[%s364 + $0x38] sm:$0xf]
      %v388 = vld [vmem:[%s364 + $0x3c] sm:$0xf]
      %v389 = vld [vmem:[%s0] sm:$0xf]
      %v390 = vld [vmem:[%s0 + $0x4] sm:$0xf]
      %v391 = vld [vmem:[%s0 + $0x8] sm:$0xf]
      %v392 = vld [vmem:[%s0 + $0xc] sm:$0xf]
      %v393 = vld [vmem:[%s0 + $0x10] sm:$0xf]
      %v394 = vld [vmem:[%s0 + $0x14] sm:$0xf]
      %v395 = vld [vmem:[%s0 + $0x18] sm:$0xf]
      %v396 = vld [vmem:[%s0 + $0x1c] sm:$0xf]
      %v397 = vld [vmem:[%s0 + $0x20] sm:$0xf]
      %v398 = vld [vmem:[%s0 + $0x24] sm:$0xf]
      %v399 = vld [vmem:[%s0 + $0x28] sm:$0xf]
      %v400 = vld [vmem:[%s0 + $0x2c] sm:$0xf]
      %v401 = vld [vmem:[%s0 + $0x30] sm:$0xf]
      %v402 = vld [vmem:[%s0 + $0x34] sm:$0xf]
      %v403 = vld [vmem:[%s0 + $0x38] sm:$0xf]
      %v404 = vld [vmem:[%s0 + $0x3c] sm:$0xf]
      %v405 = vunpack.c.l.bf16 %v373
      %v406 = vunpack.c.l.bf16 %v374
      %v407 = vunpack.c.l.bf16 %v375
      %v408 = vunpack.c.l.bf16 %v376
      %v409 = vunpack.c.l.bf16 %v377
      %v410 = vunpack.c.l.bf16 %v378
      %v411 = vunpack.c.l.bf16 %v379
      %v412 = vunpack.c.l.bf16 %v380
      %v413 = vunpack.c.l.bf16 %v381
      %v414 = vunpack.c.l.bf16 %v382
      %v415 = vunpack.c.l.bf16 %v383
      %v416 = vunpack.c.l.bf16 %v384
      %v417 = vunpack.c.l.bf16 %v385
      %v418 = vunpack.c.l.bf16 %v386
      %v419 = vunpack.c.l.bf16 %v387
      %v420 = vunpack.c.l.bf16 %v388
      %v421 = vunpack.c.l.bf16 %v389
      %v422 = vunpack.c.l.bf16 %v390
      %v423 = vunpack.c.l.bf16 %v391
      %v424 = vunpack.c.l.bf16 %v392
      %v425 = vunpack.c.l.bf16 %v393
      %v426 = vunpack.c.l.bf16 %v394
      %v427 = vunpack.c.l.bf16 %v395
      %v428 = vunpack.c.l.bf16 %v396
      %v429 = vunpack.c.l.bf16 %v397
      %v430 = vunpack.c.l.bf16 %v398
      %v431 = vunpack.c.l.bf16 %v399
      %v432 = vunpack.c.l.bf16 %v400
      %v433 = vunpack.c.l.bf16 %v401
      %v434 = vunpack.c.l.bf16 %v402
      %v435 = vunpack.c.l.bf16 %v403
      %v436 = vunpack.c.l.bf16 %v404
      %v437 = vadd.f32 %v405, %v421
      %v438 = vadd.f32 %v406, %v422
      %v439 = vadd.f32 %v407, %v423
      %v440 = vadd.f32 %v408, %v424
      %v441 = vadd.f32 %v409, %v425
      %v442 = vadd.f32 %v410, %v426
      %v443 = vadd.f32 %v411, %v427
      %v444 = vadd.f32 %v412, %v428
      %v445 = vadd.f32 %v413, %v429
      %v446 = vadd.f32 %v414, %v430
      %v447 = vadd.f32 %v415, %v431
      %v448 = vadd.f32 %v416, %v432
      %v449 = vadd.f32 %v417, %v433
      %v450 = vadd.f32 %v418, %v434
      %v451 = vadd.f32 %v419, %v435
      %v452 = vadd.f32 %v420, %v436
      %v453 = vpack.c.bf16 %v438, %v437
      %v454 = vpack.c.bf16 %v440, %v439
      %v455 = vpack.c.bf16 %v442, %v441
      %v456 = vpack.c.bf16 %v444, %v443
      %v457 = vpack.c.bf16 %v446, %v445
      %v458 = vpack.c.bf16 %v448, %v447
      %v459 = vpack.c.bf16 %v450, %v449
      %v460 = vpack.c.bf16 %v452, %v451
      %v461 = vld [vmem:[%s5] sm:$0xf]
      %v462 = vld [vmem:[%s5 + $0x4] sm:$0xf]
      %v463 = vld [vmem:[%s5 + $0x8] sm:$0xf]
      %v464 = vld [vmem:[%s5 + $0xc] sm:$0xf]
      %v465 = vld [vmem:[%s6] sm:$0x1]
      %v467 = vperm.slane %v465, 0
      %v473 = vunpack.c.l.b16 %v461
      %v474 = vunpack.c.l.b16 %v462
      %v475 = vunpack.c.l.b16 %v463
      %v476 = vunpack.c.l.b16 %v464
      %v477 = vpack.c.b16 %v474, %v473
      %v478 = vpack.c.b16 %v476, %v475
      %vm481 = vcmask 261120
      %v483 = vsel %vm481, %v453, 0
      %v486 = vsel %vm481, %v454, 0
      %v489 = vsel %vm481, %v455, 0
      %v492 = vsel %vm481, %v456, 0
      %v495 = vsel %vm481, %v457, 0
      %v498 = vsel %vm481, %v458, 0
      %v501 = vsel %vm481, %v459, 0
      %v504 = vsel %vm481, %v460, 0
      %506 = vmatpush.bf16.msra.mxu0 0
      %507 = vmatpush.bf16.msra.mxu0 0
      %508 = vmatpush.bf16.msra.mxu0 0
      %509 = vmatpush.bf16.msra.mxu0 0
      %510 = vmatpush.bf16.msra.mxu0 0
      %511 = vmatpush.bf16.msra.mxu0 0
      %512 = vmatpush.bf16.msra.mxu0 %v478
      %513 = vmatpush.bf16.msra.mxu0 %v477
      %514 = vmatmul.bf16.gmra.mxu0 %v483
      %v515 = vpop.f32.mrf.mxu0
      %v516 = vadd.f32 %v467, %v515
      %v517 = vpop.f32.mrf.mxu0
      %v518 = vadd.f32 %v467, %v517
      %519 = vmatmul.bf16.gmra.mxu0 %v486
      %v520 = vpop.f32.mrf.mxu0
      %v521 = vadd.f32 %v467, %v520
      %v522 = vpop.f32.mrf.mxu0
      %v523 = vadd.f32 %v467, %v522
      %524 = vmatmul.bf16.gmra.mxu0 %v489
      %v525 = vpop.f32.mrf.mxu0
      %v526 = vadd.f32 %v467, %v525
      %v527 = vpop.f32.mrf.mxu0
      %v528 = vadd.f32 %v467, %v527
      %529 = vmatmul.bf16.gmra.mxu0 %v492
      %v530 = vpop.f32.mrf.mxu0
      %v531 = vadd.f32 %v467, %v530
      %v532 = vpop.f32.mrf.mxu0
      %v533 = vadd.f32 %v467, %v532
      %534 = vmatmul.bf16.gmra.mxu0 %v495
      %v535 = vpop.f32.mrf.mxu0
      %v536 = vadd.f32 %v467, %v535
      %v537 = vpop.f32.mrf.mxu0
      %v538 = vadd.f32 %v467, %v537
      %539 = vmatmul.bf16.gmra.mxu0 %v498
      %v540 = vpop.f32.mrf.mxu0
      %v541 = vadd.f32 %v467, %v540
      %v542 = vpop.f32.mrf.mxu0
      %v543 = vadd.f32 %v467, %v542
      %544 = vmatmul.bf16.gmra.mxu0 %v501
      %v545 = vpop.f32.mrf.mxu0
      %v546 = vadd.f32 %v467, %v545
      %v547 = vpop.f32.mrf.mxu0
      %v548 = vadd.f32 %v467, %v547
      %549 = vmatmul.bf16.gmra.mxu0 %v504
      %v550 = vpop.f32.mrf.mxu0
      %v551 = vadd.f32 %v467, %v550
      %v552 = vpop.f32.mrf.mxu0
      %v553 = vadd.f32 %v467, %v552
      %554 = vdwg.mxu0
      %v555 = vld [vmem:[%s355] sm:$0xff]
      %v556 = vld [vmem:[%s355 + $0x8] sm:$0xff]
      %v557 = vld [vmem:[%s355 + $0x10] sm:$0xff]
      %v558 = vld [vmem:[%s355 + $0x18] sm:$0xff]
      %v559 = vld [vmem:[%s355 + $0x20] sm:$0xff]
      %v560 = vld [vmem:[%s355 + $0x28] sm:$0xff]
      %v561 = vld [vmem:[%s355 + $0x30] sm:$0xff]
      %v562 = vld [vmem:[%s355 + $0x38] sm:$0xff]
      %v563 = vld [vmem:[%s355 + $0x40] sm:$0xff]
      %v564 = vld [vmem:[%s355 + $0x48] sm:$0xff]
      %v565 = vld [vmem:[%s355 + $0x50] sm:$0xff]
      %v566 = vld [vmem:[%s355 + $0x58] sm:$0xff]
      %v567 = vld [vmem:[%s355 + $0x60] sm:$0xff]
      %v568 = vld [vmem:[%s355 + $0x68] sm:$0xff]
      %v569 = vld [vmem:[%s355 + $0x70] sm:$0xff]
      %v570 = vld [vmem:[%s355 + $0x78] sm:$0xff]
      %v571 = vld [vmem:[%s359] sm:$0x1]
      %573 = vset.pattern.permute.xlu0 0
      %574 = vperm.xlu0 %573, %v555
      %v575 = vpop.permute.xlu0 %574
      %578 = vset.pattern.permute.xlu0 0
      %579 = vperm.xlu0 %578, %v556
      %v580 = vpop.permute.xlu0 %579
      %583 = vset.pattern.permute.xlu0 0
      %584 = vperm.xlu0 %583, %v557
      %v585 = vpop.permute.xlu0 %584
      %588 = vset.pattern.permute.xlu0 0
      %589 = vperm.xlu0 %588, %v558
      %v590 = vpop.permute.xlu0 %589
      %593 = vset.pattern.permute.xlu0 0
      %594 = vperm.xlu0 %593, %v559
      %v595 = vpop.permute.xlu0 %594
      %598 = vset.pattern.permute.xlu0 0
      %599 = vperm.xlu0 %598, %v560
      %v600 = vpop.permute.xlu0 %599
      %603 = vset.pattern.permute.xlu0 0
      %604 = vperm.xlu0 %603, %v561
      %v605 = vpop.permute.xlu0 %604
      %608 = vset.pattern.permute.xlu0 0
      %609 = vperm.xlu0 %608, %v562
      %v610 = vpop.permute.xlu0 %609
      %613 = vset.pattern.permute.xlu0 0
      %614 = vperm.xlu0 %613, %v563
      %v615 = vpop.permute.xlu0 %614
      %618 = vset.pattern.permute.xlu0 0
      %619 = vperm.xlu0 %618, %v564
      %v620 = vpop.permute.xlu0 %619
      %623 = vset.pattern.permute.xlu0 0
      %624 = vperm.xlu0 %623, %v565
      %v625 = vpop.permute.xlu0 %624
      %628 = vset.pattern.permute.xlu0 0
      %629 = vperm.xlu0 %628, %v566
      %v630 = vpop.permute.xlu0 %629
      %633 = vset.pattern.permute.xlu0 0
      %634 = vperm.xlu0 %633, %v567
      %v635 = vpop.permute.xlu0 %634
      %638 = vset.pattern.permute.xlu0 0
      %639 = vperm.xlu0 %638, %v568
      %v640 = vpop.permute.xlu0 %639
      %643 = vset.pattern.permute.xlu0 0
      %644 = vperm.xlu0 %643, %v569
      %v645 = vpop.permute.xlu0 %644
      %648 = vset.pattern.permute.xlu0 0
      %649 = vperm.xlu0 %648, %v570
      %v650 = vpop.permute.xlu0 %649
      %v653 = vperm.slane %v571, 0
      %v655 = vmul.f32 %v575, %v653
      %v656 = vmul.f32 %v580, %v653
      %v657 = vmul.f32 %v585, %v653
      %v658 = vmul.f32 %v590, %v653
      %v659 = vmul.f32 %v595, %v653
      %v660 = vmul.f32 %v600, %v653
      %v661 = vmul.f32 %v605, %v653
      %v662 = vmul.f32 %v610, %v653
      %v663 = vmul.f32 %v615, %v653
      %v664 = vmul.f32 %v620, %v653
      %v665 = vmul.f32 %v625, %v653
      %v666 = vmul.f32 %v630, %v653
      %v667 = vmul.f32 %v635, %v653
      %v668 = vmul.f32 %v640, %v653
      %v669 = vmul.f32 %v645, %v653
      %v670 = vmul.f32 %v650, %v653
      %v671 = vld [vmem:[%s3] sm:$0xff]
      %v672 = vld [vmem:[%s3 + $0x8] sm:$0xff]
      %v673 = vld [vmem:[%s3 + $0x10] sm:$0xff]
      %v674 = vld [vmem:[%s3 + $0x18] sm:$0xff]
      %v675 = vld [vmem:[%s3 + $0x20] sm:$0xff]
      %v676 = vld [vmem:[%s3 + $0x28] sm:$0xff]
      %v677 = vld [vmem:[%s3 + $0x30] sm:$0xff]
      %v678 = vld [vmem:[%s3 + $0x38] sm:$0xff]
      %v679 = vld [vmem:[%s3 + $0x40] sm:$0xff]
      %v680 = vld [vmem:[%s3 + $0x48] sm:$0xff]
      %v681 = vld [vmem:[%s3 + $0x50] sm:$0xff]
      %v682 = vld [vmem:[%s3 + $0x58] sm:$0xff]
      %v683 = vld [vmem:[%s3 + $0x60] sm:$0xff]
      %v684 = vld [vmem:[%s3 + $0x68] sm:$0xff]
      %v685 = vld [vmem:[%s3 + $0x70] sm:$0xff]
      %v686 = vld [vmem:[%s3 + $0x78] sm:$0xff]
      %v687 = vadd.f32 %v655, %v671
      %v688 = vadd.f32 %v656, %v672
      %v689 = vadd.f32 %v657, %v673
      %v690 = vadd.f32 %v658, %v674
      %v691 = vadd.f32 %v659, %v675
      %v692 = vadd.f32 %v660, %v676
      %v693 = vadd.f32 %v661, %v677
      %v694 = vadd.f32 %v662, %v678
      %v695 = vadd.f32 %v663, %v679
      %v696 = vadd.f32 %v664, %v680
      %v697 = vadd.f32 %v665, %v681
      %v698 = vadd.f32 %v666, %v682
      %v699 = vadd.f32 %v667, %v683
      %v700 = vadd.f32 %v668, %v684
      %v701 = vadd.f32 %v669, %v685
      %v702 = vadd.f32 %v670, %v686
      %v703 = vld [vmem:[%s7] sm:$0xf]
      %v704 = vld [vmem:[%s7 + $0x4] sm:$0xf]
      %v705 = vld [vmem:[%s7 + $0x8] sm:$0xf]
      %v706 = vld [vmem:[%s7 + $0xc] sm:$0xf]
      %v707 = vpack.c.bf16 %v518, %v516
      %v708 = vpack.c.bf16 %v523, %v521
      %v709 = vpack.c.bf16 %v528, %v526
      %v710 = vpack.c.bf16 %v533, %v531
      %v711 = vpack.c.bf16 %v538, %v536
      %v712 = vpack.c.bf16 %v543, %v541
      %v713 = vpack.c.bf16 %v548, %v546
      %v714 = vpack.c.bf16 %v553, %v551
      %723 = vrot.lane.b32.xlu0 %v707, 96
      %v724 = vpop.permute.xlu0 %723
      %725 = vrot.lane.b32.xlu0 %v708, 96
      %v726 = vpop.permute.xlu0 %725
      %727 = vrot.lane.b32.xlu0 %v709, 96
      %v728 = vpop.permute.xlu0 %727
      %729 = vrot.lane.b32.xlu0 %v710, 96
      %v730 = vpop.permute.xlu0 %729
      %731 = vrot.lane.b32.xlu0 %v711, 96
      %v732 = vpop.permute.xlu0 %731
      %733 = vrot.lane.b32.xlu0 %v712, 96
      %v734 = vpop.permute.xlu0 %733
      %735 = vrot.lane.b32.xlu0 %v713, 96
      %v736 = vpop.permute.xlu0 %735
      %737 = vrot.lane.b32.xlu0 %v714, 96
      %v738 = vpop.permute.xlu0 %737
      %v740 = vsel %vm481, %v707, 0
      %v743 = vsel %vm481, %v708, 0
      %v746 = vsel %vm481, %v709, 0
      %v749 = vsel %vm481, %v710, 0
      %v752 = vsel %vm481, %v711, 0
      %v755 = vsel %vm481, %v712, 0
      %v758 = vsel %vm481, %v713, 0
      %v761 = vsel %vm481, %v714, 0
      %v764 = vsel %vm481, %v724, 0
      %v767 = vsel %vm481, %v726, 0
      %v770 = vsel %vm481, %v728, 0
      %v773 = vsel %vm481, %v730, 0
      %v776 = vsel %vm481, %v732, 0
      %v779 = vsel %vm481, %v734, 0
      %v782 = vsel %vm481, %v736, 0
      %v785 = vsel %vm481, %v738, 0
      %787 = vmatpush.bf16.xpose.msra.mxu0 %v785
      %788 = vmatpush.bf16.xpose.msra.mxu0 %v782
      %789 = vmatpush.bf16.xpose.msra.mxu0 %v779
      %790 = vmatpush.bf16.xpose.msra.mxu0 %v776
      %791 = vmatpush.bf16.xpose.msra.mxu0 %v773
      %792 = vmatpush.bf16.xpose.msra.mxu0 %v770
      %793 = vmatpush.bf16.xpose.msra.mxu0 %v767
      %794 = vmatpush.bf16.xpose.msra.mxu0 %v764
      %795 = vmatmul.bf16.gmra.mxu0 %v740
      %v796 = vpop.f32.mrf.mxu0
      %v797 = vadd.f32 0.0, %v796
      %v798 = vpop.f32.mrf.mxu0
      %v799 = vadd.f32 0.0, %v798
      %800 = vmatmul.bf16.gmra.mxu0 %v743
      %v801 = vpop.f32.mrf.mxu0
      %v802 = vadd.f32 0.0, %v801
      %v803 = vpop.f32.mrf.mxu0
      %v804 = vadd.f32 0.0, %v803
      %805 = vmatmul.bf16.gmra.mxu0 %v746
      %v806 = vpop.f32.mrf.mxu0
      %v807 = vadd.f32 0.0, %v806
      %v808 = vpop.f32.mrf.mxu0
      %v809 = vadd.f32 0.0, %v808
      %810 = vmatmul.bf16.gmra.mxu0 %v749
      %v811 = vpop.f32.mrf.mxu0
      %v812 = vadd.f32 0.0, %v811
      %v813 = vpop.f32.mrf.mxu0
      %v814 = vadd.f32 0.0, %v813
      %815 = vmatmul.bf16.gmra.mxu0 %v752
      %v816 = vpop.f32.mrf.mxu0
      %v817 = vadd.f32 0.0, %v816
      %v818 = vpop.f32.mrf.mxu0
      %v819 = vadd.f32 0.0, %v818
      %820 = vmatmul.bf16.gmra.mxu0 %v755
      %v821 = vpop.f32.mrf.mxu0
      %v822 = vadd.f32 0.0, %v821
      %v823 = vpop.f32.mrf.mxu0
      %v824 = vadd.f32 0.0, %v823
      %825 = vmatmul.bf16.gmra.mxu0 %v758
      %v826 = vpop.f32.mrf.mxu0
      %v827 = vadd.f32 0.0, %v826
      %v828 = vpop.f32.mrf.mxu0
      %v829 = vadd.f32 0.0, %v828
      %830 = vmatmul.bf16.gmra.mxu0 %v761
      %v831 = vpop.f32.mrf.mxu0
      %v832 = vadd.f32 0.0, %v831
      %v833 = vpop.f32.mrf.mxu0
      %v834 = vadd.f32 0.0, %v833
      %835 = vdwg.mxu0
      %v836 = vmul.f32 %v797, 0.17677669
      %v837 = vmul.f32 %v799, 0.17677669
      %v838 = vmul.f32 %v802, 0.17677669
      %v839 = vmul.f32 %v804, 0.17677669
      %v840 = vmul.f32 %v807, 0.17677669
      %v841 = vmul.f32 %v809, 0.17677669
      %v842 = vmul.f32 %v812, 0.17677669
      %v843 = vmul.f32 %v814, 0.17677669
      %v844 = vmul.f32 %v817, 0.17677669
      %v845 = vmul.f32 %v819, 0.17677669
      %v846 = vmul.f32 %v822, 0.17677669
      %v847 = vmul.f32 %v824, 0.17677669
      %v848 = vmul.f32 %v827, 0.17677669
      %v849 = vmul.f32 %v829, 0.17677669
      %v850 = vmul.f32 %v832, 0.17677669
      %v851 = vmul.f32 %v834, 0.17677669
      %v852 = vadd.f32 %v836, %v687
      %v853 = vadd.f32 %v837, %v688
      %v854 = vadd.f32 %v838, %v689
      %v855 = vadd.f32 %v839, %v690
      %v856 = vadd.f32 %v840, %v691
      %v857 = vadd.f32 %v841, %v692
      %v858 = vadd.f32 %v842, %v693
      %v859 = vadd.f32 %v843, %v694
      %v860 = vadd.f32 %v844, %v695
      %v861 = vadd.f32 %v845, %v696
      %v862 = vadd.f32 %v846, %v697
      %v863 = vadd.f32 %v847, %v698
      %v864 = vadd.f32 %v848, %v699
      %v865 = vadd.f32 %v849, %v700
      %v866 = vadd.f32 %v850, %v701
      %v867 = vadd.f32 %v851, %v702
      %868 = vmax.xlane.f32.xlu0 %v852
      %v869 = vpop.xlane.xlu0 %868
      %870 = vmax.xlane.f32.xlu0 %v853
      %v871 = vpop.xlane.xlu0 %870
      %872 = vmax.xlane.f32.xlu0 %v854
      %v873 = vpop.xlane.xlu0 %872
      %874 = vmax.xlane.f32.xlu0 %v855
      %v875 = vpop.xlane.xlu0 %874
      %876 = vmax.xlane.f32.xlu0 %v856
      %v877 = vpop.xlane.xlu0 %876
      %878 = vmax.xlane.f32.xlu0 %v857
      %v879 = vpop.xlane.xlu0 %878
      %880 = vmax.xlane.f32.xlu0 %v858
      %v881 = vpop.xlane.xlu0 %880
      %882 = vmax.xlane.f32.xlu0 %v859
      %v883 = vpop.xlane.xlu0 %882
      %884 = vmax.xlane.f32.xlu0 %v860
      %v885 = vpop.xlane.xlu0 %884
      %886 = vmax.xlane.f32.xlu0 %v861
      %v887 = vpop.xlane.xlu0 %886
      %888 = vmax.xlane.f32.xlu0 %v862
      %v889 = vpop.xlane.xlu0 %888
      %890 = vmax.xlane.f32.xlu0 %v863
      %v891 = vpop.xlane.xlu0 %890
      %892 = vmax.xlane.f32.xlu0 %v864
      %v893 = vpop.xlane.xlu0 %892
      %894 = vmax.xlane.f32.xlu0 %v865
      %v895 = vpop.xlane.xlu0 %894
      %896 = vmax.xlane.f32.xlu0 %v866
      %v897 = vpop.xlane.xlu0 %896
      %898 = vmax.xlane.f32.xlu0 %v867
      %v899 = vpop.xlane.xlu0 %898
      %v900 = vsub.f32 %v852, %v869
      %v901 = vsub.f32 %v853, %v871
      %v902 = vsub.f32 %v854, %v873
      %v903 = vsub.f32 %v855, %v875
      %v904 = vsub.f32 %v856, %v877
      %v905 = vsub.f32 %v857, %v879
      %v906 = vsub.f32 %v858, %v881
      %v907 = vsub.f32 %v859, %v883
      %v908 = vsub.f32 %v860, %v885
      %v909 = vsub.f32 %v861, %v887
      %v910 = vsub.f32 %v862, %v889
      %v911 = vsub.f32 %v863, %v891
      %v912 = vsub.f32 %v864, %v893
      %v913 = vsub.f32 %v865, %v895
      %v914 = vsub.f32 %v866, %v897
      %v915 = vsub.f32 %v867, %v899
      %v916 = vmul.f32 %v900, 1.442695
      %v917 = vpow.pop %v916
      %v918 = vmul.f32 %v901, 1.442695
      %v919 = vpow.pop %v918
      %v920 = vmul.f32 %v902, 1.442695
      %v921 = vpow.pop %v920
      %v922 = vmul.f32 %v903, 1.442695
      %v923 = vpow.pop %v922
      %v924 = vmul.f32 %v904, 1.442695
      %v925 = vpow.pop %v924
      %v926 = vmul.f32 %v905, 1.442695
      %v927 = vpow.pop %v926
      %v928 = vmul.f32 %v906, 1.442695
      %v929 = vpow.pop %v928
      %v930 = vmul.f32 %v907, 1.442695
      %v931 = vpow.pop %v930
      %v932 = vmul.f32 %v908, 1.442695
      %v933 = vpow.pop %v932
      %v934 = vmul.f32 %v909, 1.442695
      %v935 = vpow.pop %v934
      %v936 = vmul.f32 %v910, 1.442695
      %v937 = vpow.pop %v936
      %v938 = vmul.f32 %v911, 1.442695
      %v939 = vpow.pop %v938
      %v940 = vmul.f32 %v912, 1.442695
      %v941 = vpow.pop %v940
      %v942 = vmul.f32 %v913, 1.442695
      %v943 = vpow.pop %v942
      %v944 = vmul.f32 %v914, 1.442695
      %v945 = vpow.pop %v944
      %v946 = vmul.f32 %v915, 1.442695
      %v947 = vpow.pop %v946
      %948 = vadd.xlane.f32.xlu0 %v917
      %v949 = vpop.xlane.xlu0 %948
      %950 = vadd.xlane.f32.xlu0 %v919
      %v951 = vpop.xlane.xlu0 %950
      %952 = vadd.xlane.f32.xlu0 %v921
      %v953 = vpop.xlane.xlu0 %952
      %954 = vadd.xlane.f32.xlu0 %v923
      %v955 = vpop.xlane.xlu0 %954
      %956 = vadd.xlane.f32.xlu0 %v925
      %v957 = vpop.xlane.xlu0 %956
      %958 = vadd.xlane.f32.xlu0 %v927
      %v959 = vpop.xlane.xlu0 %958
      %960 = vadd.xlane.f32.xlu0 %v929
      %v961 = vpop.xlane.xlu0 %960
      %962 = vadd.xlane.f32.xlu0 %v931
      %v963 = vpop.xlane.xlu0 %962
      %964 = vadd.xlane.f32.xlu0 %v933
      %v965 = vpop.xlane.xlu0 %964
      %966 = vadd.xlane.f32.xlu0 %v935
      %v967 = vpop.xlane.xlu0 %966
      %968 = vadd.xlane.f32.xlu0 %v937
      %v969 = vpop.xlane.xlu0 %968
      %970 = vadd.xlane.f32.xlu0 %v939
      %v971 = vpop.xlane.xlu0 %970
      %972 = vadd.xlane.f32.xlu0 %v941
      %v973 = vpop.xlane.xlu0 %972
      %974 = vadd.xlane.f32.xlu0 %v943
      %v975 = vpop.xlane.xlu0 %974
      %976 = vadd.xlane.f32.xlu0 %v945
      %v977 = vpop.xlane.xlu0 %976
      %978 = vadd.xlane.f32.xlu0 %v947
      %v979 = vpop.xlane.xlu0 %978
      %v980 = vrcp.pop %v949
      %v981 = vrcp.pop %v951
      %v982 = vrcp.pop %v953
      %v983 = vrcp.pop %v955
      %v984 = vrcp.pop %v957
      %v985 = vrcp.pop %v959
      %v986 = vrcp.pop %v961
      %v987 = vrcp.pop %v963
      %v988 = vrcp.pop %v965
      %v989 = vrcp.pop %v967
      %v990 = vrcp.pop %v969
      %v991 = vrcp.pop %v971
      %v992 = vrcp.pop %v973
      %v993 = vrcp.pop %v975
      %v994 = vrcp.pop %v977
      %v995 = vrcp.pop %v979
      %v996 = vmul.f32 %v917, %v980
      %v997 = vmul.f32 %v919, %v981
      %v998 = vmul.f32 %v921, %v982
      %v999 = vmul.f32 %v923, %v983
      %v1000 = vmul.f32 %v925, %v984
      %v1001 = vmul.f32 %v927, %v985
      %v1002 = vmul.f32 %v929, %v986
      %v1003 = vmul.f32 %v931, %v987
      %v1004 = vmul.f32 %v933, %v988
      %v1005 = vmul.f32 %v935, %v989
      %v1006 = vmul.f32 %v937, %v990
      %v1007 = vmul.f32 %v939, %v991
      %v1008 = vmul.f32 %v941, %v992
      %v1009 = vmul.f32 %v943, %v993
      %v1010 = vmul.f32 %v945, %v994
      %v1011 = vmul.f32 %v947, %v995
      %v1012 = vpack.c.bf16 %v997, %v996
      %v1013 = vpack.c.bf16 %v999, %v998
      %v1014 = vpack.c.bf16 %v1001, %v1000
      %v1015 = vpack.c.bf16 %v1003, %v1002
      %v1016 = vpack.c.bf16 %v1005, %v1004
      %v1017 = vpack.c.bf16 %v1007, %v1006
      %v1018 = vpack.c.bf16 %v1009, %v1008
      %v1019 = vpack.c.bf16 %v1011, %v1010
      %1020 = vrot.lane.b32.xlu0 %v707, 64
      %v1021 = vpop.permute.xlu0 %1020
      %1022 = vrot.lane.b32.xlu0 %v708, 64
      %v1023 = vpop.permute.xlu0 %1022
      %1024 = vrot.lane.b32.xlu0 %v709, 64
      %v1025 = vpop.permute.xlu0 %1024
      %1026 = vrot.lane.b32.xlu0 %v710, 64
      %v1027 = vpop.permute.xlu0 %1026
      %1028 = vrot.lane.b32.xlu0 %v711, 64
      %v1029 = vpop.permute.xlu0 %1028
      %1030 = vrot.lane.b32.xlu0 %v712, 64
      %v1031 = vpop.permute.xlu0 %1030
      %1032 = vrot.lane.b32.xlu0 %v713, 64
      %v1033 = vpop.permute.xlu0 %1032
      %1034 = vrot.lane.b32.xlu0 %v714, 64
      %v1035 = vpop.permute.xlu0 %1034
      %1044 = vmatpush.bf16.msra.mxu0 %v1035
      %1045 = vmatpush.bf16.msra.mxu0 %v1033
      %1046 = vmatpush.bf16.msra.mxu0 %v1031
      %1047 = vmatpush.bf16.msra.mxu0 %v1029
      %1048 = vmatpush.bf16.msra.mxu0 %v1027
      %1049 = vmatpush.bf16.msra.mxu0 %v1025
      %1050 = vmatpush.bf16.msra.mxu0 %v1023
      %1051 = vmatpush.bf16.msra.mxu0 %v1021
      %1052 = vmatmul.bf16.gmra.mxu0 %v1012
      %v1053 = vpop.f32.mrf.mxu0
      %v1054 = vadd.f32 0.0, %v1053
      %v1055 = vpop.f32.mrf.mxu0
      %v1056 = vadd.f32 0.0, %v1055
      %1057 = vmatmul.bf16.gmra.mxu0 %v1013
      %v1058 = vpop.f32.mrf.mxu0
      %v1059 = vadd.f32 0.0, %v1058
      %v1060 = vpop.f32.mrf.mxu0
      %v1061 = vadd.f32 0.0, %v1060
      %1062 = vmatmul.bf16.gmra.mxu0 %v1014
      %v1063 = vpop.f32.mrf.mxu0
      %v1064 = vadd.f32 0.0, %v1063
      %v1065 = vpop.f32.mrf.mxu0
      %v1066 = vadd.f32 0.0, %v1065
      %1067 = vmatmul.bf16.gmra.mxu0 %v1015
      %v1068 = vpop.f32.mrf.mxu0
      %v1069 = vadd.f32 0.0, %v1068
      %v1070 = vpop.f32.mrf.mxu0
      %v1071 = vadd.f32 0.0, %v1070
      %1072 = vmatmul.bf16.gmra.mxu0 %v1016
      %v1073 = vpop.f32.mrf.mxu0
      %v1074 = vadd.f32 0.0, %v1073
      %v1075 = vpop.f32.mrf.mxu0
      %v1076 = vadd.f32 0.0, %v1075
      %1077 = vmatmul.bf16.gmra.mxu0 %v1017
      %v1078 = vpop.f32.mrf.mxu0
      %v1079 = vadd.f32 0.0, %v1078
      %v1080 = vpop.f32.mrf.mxu0
      %v1081 = vadd.f32 0.0, %v1080
      %1082 = vmatmul.bf16.gmra.mxu0 %v1018
      %v1083 = vpop.f32.mrf.mxu0
      %v1084 = vadd.f32 0.0, %v1083
      %v1085 = vpop.f32.mrf.mxu0
      %v1086 = vadd.f32 0.0, %v1085
      %1087 = vmatmul.bf16.gmra.mxu0 %v1019
      %v1088 = vpop.f32.mrf.mxu0
      %v1089 = vadd.f32 0.0, %v1088
      %v1090 = vpop.f32.mrf.mxu0
      %v1091 = vadd.f32 0.0, %v1090
      %1092 = vdwg.mxu0
      %v1093 = vpack.c.bf16 %v1056, %v1054
      %v1094 = vpack.c.bf16 %v1061, %v1059
      %v1095 = vpack.c.bf16 %v1066, %v1064
      %v1096 = vpack.c.bf16 %v1071, %v1069
      %v1097 = vpack.c.bf16 %v1076, %v1074
      %v1098 = vpack.c.bf16 %v1081, %v1079
      %v1099 = vpack.c.bf16 %v1086, %v1084
      %v1100 = vpack.c.bf16 %v1091, %v1089
      %v1101 = vld [vmem:[%s8] sm:$0x1]
      %v1103 = vperm.slane %v1101, 0
      %v1109 = vunpack.c.l.b16 %v703
      %v1110 = vunpack.c.l.b16 %v704
      %v1111 = vunpack.c.l.b16 %v705
      %v1112 = vunpack.c.l.b16 %v706
      %v1113 = vpack.c.b16 %v1110, %v1109
      %v1114 = vpack.c.b16 %v1112, %v1111
      %v1118 = vsel %vm481, %v1093, 0
      %v1121 = vsel %vm481, %v1094, 0
      %v1124 = vsel %vm481, %v1095, 0
      %v1127 = vsel %vm481, %v1096, 0
      %v1130 = vsel %vm481, %v1097, 0
      %v1133 = vsel %vm481, %v1098, 0
      %v1136 = vsel %vm481, %v1099, 0
      %v1139 = vsel %vm481, %v1100, 0
      %1141 = vmatpush.bf16.msra.mxu0 0
      %1142 = vmatpush.bf16.msra.mxu0 0
      %1143 = vmatpush.bf16.msra.mxu0 0
      %1144 = vmatpush.bf16.msra.mxu0 0
      %1145 = vmatpush.bf16.msra.mxu0 0
      %1146 = vmatpush.bf16.msra.mxu0 0
      %1147 = vmatpush.bf16.msra.mxu0 %v1114
      %1148 = vmatpush.bf16.msra.mxu0 %v1113
      %1149 = vmatmul.bf16.gmra.mxu0 %v1118
      %v1150 = vpop.f32.mrf.mxu0
      %v1151 = vadd.f32 %v1103, %v1150
      %v1152 = vpop.f32.mrf.mxu0
      %v1153 = vadd.f32 %v1103, %v1152
      %1154 = vmatmul.bf16.gmra.mxu0 %v1121
      %v1155 = vpop.f32.mrf.mxu0
      %v1156 = vadd.f32 %v1103, %v1155
      %v1157 = vpop.f32.mrf.mxu0
      %v1158 = vadd.f32 %v1103, %v1157
      %1159 = vmatmul.bf16.gmra.mxu0 %v1124
      %v1160 = vpop.f32.mrf.mxu0
      %v1161 = vadd.f32 %v1103, %v1160
      %v1162 = vpop.f32.mrf.mxu0
      %v1163 = vadd.f32 %v1103, %v1162
      %1164 = vmatmul.bf16.gmra.mxu0 %v1127
      %v1165 = vpop.f32.mrf.mxu0
      %v1166 = vadd.f32 %v1103, %v1165
      %v1167 = vpop.f32.mrf.mxu0
      %v1168 = vadd.f32 %v1103, %v1167
      %1169 = vmatmul.bf16.gmra.mxu0 %v1130
      %v1170 = vpop.f32.mrf.mxu0
      %v1171 = vadd.f32 %v1103, %v1170
      %v1172 = vpop.f32.mrf.mxu0
      %v1173 = vadd.f32 %v1103, %v1172
      %1174 = vmatmul.bf16.gmra.mxu0 %v1133
      %v1175 = vpop.f32.mrf.mxu0
      %v1176 = vadd.f32 %v1103, %v1175
      %v1177 = vpop.f32.mrf.mxu0
      %v1178 = vadd.f32 %v1103, %v1177
      %1179 = vmatmul.bf16.gmra.mxu0 %v1136
      %v1180 = vpop.f32.mrf.mxu0
      %v1181 = vadd.f32 %v1103, %v1180
      %v1182 = vpop.f32.mrf.mxu0
      %v1183 = vadd.f32 %v1103, %v1182
      %1184 = vmatmul.bf16.gmra.mxu0 %v1139
      %v1185 = vpop.f32.mrf.mxu0
      %v1186 = vadd.f32 %v1103, %v1185
      %v1187 = vpop.f32.mrf.mxu0
      %v1188 = vadd.f32 %v1103, %v1187
      %1189 = vdwg.mxu0
      %1190 = vst.msk [vmem:[%s370] sm:$0xff] %vm481, %v1151
      %1191 = vst.msk [vmem:[%s370 + $0x8] sm:$0xff] %vm481, %v1153
      %1192 = vst.msk [vmem:[%s370 + $0x10] sm:$0xff] %vm481, %v1156
      %1193 = vst.msk [vmem:[%s370 + $0x18] sm:$0xff] %vm481, %v1158
      %1194 = vst.msk [vmem:[%s370 + $0x20] sm:$0xff] %vm481, %v1161
      %1195 = vst.msk [vmem:[%s370 + $0x28] sm:$0xff] %vm481, %v1163
      %1196 = vst.msk [vmem:[%s370 + $0x30] sm:$0xff] %vm481, %v1166
      %1197 = vst.msk [vmem:[%s370 + $0x38] sm:$0xff] %vm481, %v1168
      %1198 = vst.msk [vmem:[%s370 + $0x40] sm:$0xff] %vm481, %v1171
      %1199 = vst.msk [vmem:[%s370 + $0x48] sm:$0xff] %vm481, %v1173
      %1200 = vst.msk [vmem:[%s370 + $0x50] sm:$0xff] %vm481, %v1176
      %1201 = vst.msk [vmem:[%s370 + $0x58] sm:$0xff] %vm481, %v1178
      %1202 = vst.msk [vmem:[%s370 + $0x60] sm:$0xff] %vm481, %v1181
      %1203 = vst.msk [vmem:[%s370 + $0x68] sm:$0xff] %vm481, %v1183
      %1204 = vst.msk [vmem:[%s370 + $0x70] sm:$0xff] %vm481, %v1186
      %1205 = vst.msk [vmem:[%s370 + $0x78] sm:$0xff] %vm481, %v1188
      %s1206 = smul.u32 16, %s20
      %p1207 = scmp.lt.s32.totalorder %s1206, 127
      %s1208 = scalar_select %p1207, %s1206, 127
      %s1209 = smul.addr %s1208, 8
      %s1210 = scalar_lea.vmem %s9, %s1209
      // Predicated region
      $region57: #{tpu_custom_call.1} parent=55 // pred_check
        %p1211 = pneg %p242
      $region58: #{tpu_custom_call.1} parent=55 // pred_check_branch
        %1213 = sbr.rel (%p1211) target = $region60
      $region59: #{tpu_custom_call.1} parent=55 // pred_region
        %s1214 = smul.u32 16, %s20
      $region60: #{tpu_custom_call.1} parent=55 // pred_fallthru
        _
    $region56: #{tpu_custom_call.1} parent=5 // pred_fallthru
      _
    %p1215 = scmp.le.s32.totalorder 2, %s15
    // Predicated region
    $region61: #{tpu_custom_call.1} parent=5 // pred_check
      %p1216 = pneg %p1215
    $region62: #{tpu_custom_call.1} parent=5 // pred_check_branch
      %1218 = sbr.rel (%p1216) target = $region64
    $region63: #{tpu_custom_call.1} parent=5 // pred_region
      %s1219 = ssub.s32 %s15, 2
      // Predicated region
      $region65: #{tpu_custom_call.1} parent=63 // pred_check
        %p1220 = pneg %p248
      $region66: #{tpu_custom_call.1} parent=63 // pred_check_branch
        %1222 = sbr.rel (%p1220) target = $region68
      $region67: #{tpu_custom_call.1} parent=63 // pred_region
        %s1223 = smul.u32 16, %s21
        %p1224 = scmp.lt.s32.totalorder %s1223, 127
        %s1225 = scalar_select %p1224, %s1223, 127
        %s1226 = smul.addr %s1225, 8
        %s1227 = scalar_lea.vmem %s9, %s1226
      $region68: #{tpu_custom_call.1} parent=63 // pred_fallthru
        _
    $region64: #{tpu_custom_call.1} parent=5 // pred_fallthru
      _
  $region6: #{tpu_custom_call.1} parent=0 // loop_footer
    %s19 = sadd.s32 1, %s15
  $region7: #{tpu_custom_call.1} parent=0 // loop_footer_branch
    %14 = sbr.rel target = $region3
  $region8: #{tpu_custom_call.1} parent=0 // loop_exit
    _

</llo_original>
